<compile_context>
chip_gen: v5e
topology: v5e:2x2
jax: 0.10.0
libtpu: 0.0.40
codegen_flags: <defaults>
</compile_context>

<pallas_src>
import functools

import jax
import jax.numpy as jnp
from jax.experimental import pallas as pl
from jax.experimental.pallas import tpu as pltpu

# Full-precision matmuls so the Pallas kernels and the pure-JAX reference agree tightly.
jax.config.update("jax_default_matmul_precision", "highest")


def _round_up(x, m):
    return ((x + m - 1) // m) * m


def _vmem_tile_budget_bytes():
    """Per-kernel VMEM budget for working tiles, scaled to the chip generation."""
    cap = 64 << 20  # conservative default = v7x per-TC VMEM
    try:
        cap = int(pltpu.get_tpu_info().vmem_capacity_bytes)
    except Exception:
        pass
    # ~3/8 of physical VMEM, clamped: ~24 MiB on v7x (64 MiB/TC), 48 MiB on v5e/v6e (128 MiB).
    return int(min(max(cap * 3 // 8, 16 << 20), 48 << 20))


# ----------------------------------------------------------------------------
# Pallas kernel 1: 1x1 conv in NCHW layout (per-batch, H*W-tiled matmul + bias)
# ----------------------------------------------------------------------------
def _input_proj_kernel(x_ref, wt_ref, b_ref, o_ref):
    # x_ref: [1, C_in, thw]   wt_ref: [hidden, C_in]   b_ref: [hidden, 1]
    o_ref[0] = (
        jnp.dot(wt_ref[...], x_ref[0], preferred_element_type=jnp.float32)
        + b_ref[...]
    )


def _proj_footprint_bytes(thw, c_in, hidden, itemsize=4):
    return itemsize * (
        2 * c_in * thw                      # x tile, double-buffered
        + 2 * hidden * thw                  # output tile, double-buffered
        + 2 * (hidden * c_in + hidden)      # resident weight + bias (counted 2x, conservative)
    )


def _choose_lane_tile(hw_pad, c_in, hidden, budget_bytes):
    """Largest multiple-of-128 divisor of hw_pad whose double-buffered footprint fits,
    capped so the lane axis keeps >= 2 grid steps once hw_pad >= 256."""
    cap = min(2048, hw_pad if hw_pad < 256 else hw_pad // 2)
    cap = max(128, (cap // 128) * 128)
    t = cap
    while t > 128:
        if hw_pad % t == 0 and _proj_footprint_bytes(t, c_in, hidden) <= budget_bytes:
            return t
        t -= 128
    return 128


def input_proj_1x1(src_nchw, w, b, *, stream_dtype=jnp.float32):
    """1x1 Conv2d computed in NCHW layout. w: [C_in, hidden], b: [hidden]."""
    B, C, H, W = src_nchw.shape
    hidden = w.shape[1]
    HW = H * W
    hw_pad = _round_up(HW, 128)              # lane-dense: no masked partial stores
    budget = _vmem_tile_budget_bytes()
    thw = _choose_lane_tile(hw_pad, C, hidden, budget)

    x = src_nchw.reshape(B, C, HW)           # free reshape, stays NCHW (no transpose)
    if hw_pad != HW:
        x = jnp.pad(x, ((0, 0), (0, 0), (0, hw_pad - HW)))
    wt = jnp.transpose(w, (1, 0))            # [hidden, C_in] (tiny, one-time)
    bias = b.reshape(hidden, 1).astype(jnp.float32)
    if stream_dtype != jnp.float32:
        # HBM-bound kernel: bf16 streaming halves DMA bytes (v6e/v7x); accumulate in f32.
        x = x.astype(stream_dtype)
        wt = wt.astype(stream_dtype)

    grid = (B, hw_pad // thw)
    footprint = _proj_footprint_bytes(thw, C, hidden)
    vmem_limit = int(max(footprint + (4 << 20), 8 << 20))

    itemsize = jnp.dtype(stream_dtype).itemsize
    flops = 2.0 * B * hw_pad * C * hidden
    bytes_accessed = (
        float(itemsize) * (B * C * hw_pad + C * hidden)
        + 4.0 * (hidden + B * hidden * hw_pad)
    )

    out = pl.pallas_call(
        _input_proj_kernel,
        out_shape=jax.ShapeDtypeStruct((B, hidden, hw_pad), jnp.float32),
        grid=grid,
        in_specs=[
            pl.BlockSpec((1, C, thw), lambda bi, j: (bi, 0, j)),
            pl.BlockSpec((hidden, C), lambda bi, j: (0, 0)),   # resident weight
            pl.BlockSpec((hidden, 1), lambda bi, j: (0, 0)),   # resident bias
        ],
        out_specs=pl.BlockSpec((1, hidden, thw), lambda bi, j: (bi, 0, j)),
        compiler_params=pltpu.CompilerParams(
            dimension_semantics=("parallel", "parallel"),
            vmem_limit_bytes=vmem_limit,
        ),
        cost_estimate=pl.CostEstimate(
            flops=int(flops), transcendentals=0, bytes_accessed=int(bytes_accessed)
        ),
    )(x, wt, bias)
    if hw_pad != HW:
        out = out[:, :, :HW]
    return out.reshape(B, hidden, H, W)      # stays NCHW, no transpose


# ----------------------------------------------------------------------------
# Pallas kernel 2: fused detection heads (row-tiled, lane-dense outputs)
#   t       = hs @ [class_w_pad | mlp_w1] + [class_b_pad | mlp_b1]   (fused matmul)
#   logits  = t[:, :NC_PAD]                                          (128-wide, padded)
#   coords  = sigmoid(relu(relu(t[:, NC_PAD:]) @ W2 + b2) @ W3_pad + b3_pad)
# ----------------------------------------------------------------------------
def _heads_kernel(hs_ref, wa_ref, ba_ref, w2_ref, b2_ref, w3_ref, b3_ref,
                  logits_ref, coords_ref, *, nc_pad):
    hs = hs_ref[...]                                                   # [tm, hidden]
    t = jnp.dot(hs, wa_ref[...], preferred_element_type=jnp.float32) + ba_ref[...]
    logits_ref[...] = t[:, :nc_pad]                                    # lane-aligned split
    h = jnp.maximum(t[:, nc_pad:], 0.0).astype(w2_ref.dtype)
    h = jnp.maximum(
        jnp.dot(h, w2_ref[...], preferred_element_type=jnp.float32) + b2_ref[...],
        0.0,
    ).astype(w3_ref.dtype)
    y = jnp.dot(h, w3_ref[...], preferred_element_type=jnp.float32) + b3_ref[...]
    # TODO(synk): 124/128 coords columns are padding; if this branch ever shows up in the
    # bundle (EUP/MXU visible), slice before the last matmul/sigmoid. Kept 128-wide here
    # for lane-dense stores.
    coords_ref[...] = jax.nn.sigmoid(y)


def pack_head_params(p, *, stream_dtype=jnp.float32):
    """Fuse class_embed with MLP layer 1 and zero-pad to lane-dense widths.
    Done ONCE at init (hoisted out of the per-forward path)."""
    hidden = p["mlp_w1"].shape[0]
    ncls1 = p["class_w"].shape[1]
    nc_pad = _round_up(ncls1, 128)          # lane-dense logits width
    co_pad = 128                            # lane-dense coords width (>= 4)
    wc = jnp.zeros((hidden, nc_pad), jnp.float32).at[:, :ncls1].set(p["class_w"])
    bc = jnp.zeros((nc_pad,), jnp.float32).at[:ncls1].set(p["class_b"])
    w3 = jnp.zeros((hidden, co_pad), jnp.float32).at[:, :4].set(p["mlp_w3"])
    b3 = jnp.zeros((co_pad,), jnp.float32).at[:4].set(p["mlp_b3"])
    return {
        "wa": jnp.concatenate([wc, p["mlp_w1"]], axis=1).astype(stream_dtype),
        "ba": jnp.concatenate([bc, p["mlp_b1"]], axis=0).reshape(1, -1).astype(jnp.float32),
        "w2": p["mlp_w2"].astype(stream_dtype),
        "b2": p["mlp_b2"].reshape(1, -1).astype(jnp.float32),
        "w3": w3.astype(stream_dtype),
        "b3": b3.reshape(1, -1).astype(jnp.float32),
        "nc_pad": nc_pad, "co_pad": co_pad, "ncls1": ncls1, "hidden": hidden,
        "stream_dtype": stream_dtype,
    }


def detection_heads(hs_flat, hp):
    m, hidden = hs_flat.shape
    nc_pad, co_pad, ncls1 = hp["nc_pad"], hp["co_pad"], hp["ncls1"]
    wa_w = nc_pad + hidden

    # Row tiling over m = L*B*Q. Big tiles amortize the ~0.35us per-grid-step overhead
    # (real LETR has m ~ 12000 -> tm = 1024, 12 steps).
    if m >= 4096:
        tm = 1024
    elif m >= 1024:
        tm = 512
    elif m >= 256:
        tm = 256
    else:
        tm = _round_up(m, 8)
    m_pad = _round_up(m, tm)
    hs_p = hs_flat if m_pad == m else jnp.pad(hs_flat, ((0, m_pad - m), (0, 0)))
    hs_p = hs_p.astype(hp["stream_dtype"])
    grid = (m_pad // tm,)

    footprint = 4 * (
        2 * tm * hidden                       # hs tiles (double-buffered)
        + 2 * (hidden * wa_w + wa_w)          # fused class/W1 + bias
        + 2 * (hidden * hidden + hidden)      # W2 + b2
        + 2 * (hidden * co_pad + co_pad)      # W3 + b3
        + 2 * tm * (nc_pad + co_pad)          # output tiles (double-buffered)
        + tm * (wa_w + hidden)                # intermediate t / h (may spill to VMEM)
    )
    vmem_limit = int(max(footprint + (4 << 20), 8 << 20))

    flops = 2.0 * m_pad * hidden * (wa_w + hidden + co_pad)
    bytes_accessed = 4.0 * (
        m_pad * hidden
        + hidden * (wa_w + hidden + co_pad) + (wa_w + hidden + co_pad)
        + m_pad * (nc_pad + co_pad)
    )

    kernel = functools.partial(_heads_kernel, nc_pad=nc_pad)
    const = lambda shape: pl.BlockSpec(shape, lambda i: (0,) * len(shape))
    logits_p, coords_p = pl.pallas_call(
        kernel,
        out_shape=(
            jax.ShapeDtypeStruct((m_pad, nc_pad), jnp.float32),
            jax.ShapeDtypeStruct((m_pad, co_pad), jnp.float32),
        ),
        grid=grid,
        in_specs=[
            pl.BlockSpec((tm, hidden), lambda i: (i, 0)),      # hs rows (tiled)
            const((hidden, wa_w)), const((1, wa_w)),           # resident weights/biases
            const((hidden, hidden)), const((1, hidden)),
            const((hidden, co_pad)), const((1, co_pad)),
        ],
        out_specs=(
            pl.BlockSpec((tm, nc_pad), lambda i: (i, 0)),
            pl.BlockSpec((tm, co_pad), lambda i: (i, 0)),
        ),
        compiler_params=pltpu.CompilerParams(
            dimension_semantics=("parallel",),
            vmem_limit_bytes=vmem_limit,
        ),
        cost_estimate=pl.CostEstimate(
            flops=int(flops),
            transcendentals=int(m_pad * co_pad),
            bytes_accessed=int(bytes_accessed),
        ),
    )(hs_p, hp["wa"], hp["ba"], hp["w2"], hp["b2"], hp["w3"], hp["b3"])

    return logits_p[:m, :ncls1], coords_p[:m, :4]


# ----------------------------------------------------------------------------
# Deterministic parameter init (PyTorch-Linear-like uniform, fixed seed)
# ----------------------------------------------------------------------------
def _uniform(key, shape, fan_in):
    bound = 1.0 / jnp.sqrt(jnp.asarray(fan_in, jnp.float32))
    return jax.random.uniform(key, shape, jnp.float32, -bound, bound)


def init_letr_params(key, c_in, hidden, num_classes, num_queries, num_dec_layers,
                     *, stream_dtype=jnp.float32):
    ks = jax.random.split(key, 16)
    p = {}
    # input_proj: Conv2d(c_in, hidden, kernel_size=1)  -> stored as [c_in, hidden]
    p["proj_w"] = _uniform(ks[0], (c_in, hidden), c_in)
    p["proj_b"] = _uniform(ks[1], (hidden,), c_in)
    # class_embed: Linear(hidden, num_classes + 1)
    p["class_w"] = _uniform(ks[2], (hidden, num_classes + 1), hidden)
    p["class_b"] = _uniform(ks[3], (num_classes + 1,), hidden)
    # lines_embed: MLP(hidden, hidden, 4, num_layers=3)
    p["mlp_w1"] = _uniform(ks[4], (hidden, hidden), hidden)
    p["mlp_b1"] = _uniform(ks[5], (hidden,), hidden)
    p["mlp_w2"] = _uniform(ks[6], (hidden, hidden), hidden)
    p["mlp_b2"] = _uniform(ks[7], (hidden,), hidden)
    p["mlp_w3"] = _uniform(ks[8], (hidden, 4), hidden)
    p["mlp_b3"] = _uniform(ks[9], (4,), hidden)
    # query_embed: nn.Embedding(num_queries, hidden)
    p["query_embed"] = jax.random.normal(ks[10], (num_queries, hidden), jnp.float32)
    # transformer-stub mixing weights (stand-in for the injected transformer module)
    p["tr_wm"] = _uniform(ks[11], (num_dec_layers, hidden, hidden), hidden)
    p["tr_wq"] = _uniform(ks[12], (num_dec_layers, hidden, hidden), hidden)
    # fused + lane-padded detection-head weights (done once, not per forward)
    p["heads"] = pack_head_params(p, stream_dtype=stream_dtype)
    return p


# ----------------------------------------------------------------------------
# Stubs for injected dependencies (backbone / transformer are ctor args of LETR)
# ----------------------------------------------------------------------------
def backbone_stub(samples, key, c_in, hidden, feat_h, feat_w):
    # TODO(synk): real ResNet backbone + positional encoding are external modules;
    # stubbed with deterministic synthetic features.
    B = samples.shape[0]
    k1, k2 = jax.random.split(key)
    src = jax.random.normal(k1, (B, c_in, feat_h, feat_w), jnp.float32)
    mask = jnp.zeros((B, feat_h, feat_w), dtype=bool)  # no padding
    pos = jax.random.normal(k2, (B, hidden, feat_h, feat_w), jnp.float32)
    return src, mask, pos


def transformer_stub(memory_nchw, mask, query_embed, pos_nchw, p):
    # TODO(synk): the DETR-style transformer is an injected dependency; stubbed with a
    # deterministic pooled-memory / query mixing that preserves the [L, B, Q, D] output shape.
    B, D, H, W = memory_nchw.shape
    Q = query_embed.shape[0]
    L = p["tr_wm"].shape[0]
    mem = (memory_nchw + pos_nchw).reshape(B, D, H * W).transpose(0, 2, 1)  # [B, HW, D]
    valid = (~mask.reshape(B, H * W)).astype(jnp.float32)[..., None]
    pooled = (mem * valid).sum(1) / jnp.maximum(valid.sum(1), 1.0)          # [B, D]
    tgt = jnp.zeros((B, Q, D), jnp.float32)
    hs_layers = []
    for l in range(L):
        mix = pooled @ p["tr_wm"][l]                                        # [B, D]
        qry = query_embed @ p["tr_wq"][l]                                   # [Q, D]
        tgt = jnp.tanh(tgt + qry[None, :, :] + mix[:, None, :])
        hs_layers.append(tgt)
    return jnp.stack(hs_layers, axis=0)  # [L, B, Q, D]


# ----------------------------------------------------------------------------
# LETR forward (Pallas path) + pure-JAX reference
# ----------------------------------------------------------------------------
def letr_forward(samples, params, *, c_in, hidden, feat_h, feat_w, aux_loss=True,
                 stream_dtype=jnp.float32, feat_key=None):
    if feat_key is None:
        feat_key = jax.random.PRNGKey(1)
    src, mask, pos = backbone_stub(samples, feat_key, c_in, hidden, feat_h, feat_w)

    proj = input_proj_1x1(src, params["proj_w"], params["proj_b"],
                          stream_dtype=stream_dtype)                        # Pallas
    hs = transformer_stub(proj, mask, params["query_embed"], pos, params)   # [L,B,Q,D]

    L, B, Q, D = hs.shape
    logits_flat, coords_flat = detection_heads(hs.reshape(L * B * Q, D),
                                               params["heads"])             # Pallas
    outputs_class = logits_flat.reshape(L, B, Q, -1)
    outputs_coord = coords_flat.reshape(L, B, Q, 4)

    out = {"pred_logits": outputs_class[-1], "pred_lines": outputs_coord[-1]}
    if aux_loss:
        out["aux_outputs"] = [
            {"pred_logits": a, "pred_lines": b}
            for a, b in zip(outputs_class[:-1], outputs_coord[:-1])
        ]
    return out


def letr_forward_reference(samples, params, *, c_in, hidden, feat_h, feat_w,
                           aux_loss=True, feat_key=None):
    """Pure-JAX reference for numerics validation."""
    if feat_key is None:
        feat_key = jax.random.PRNGKey(1)
    src, mask, pos = backbone_stub(samples, feat_key, c_in, hidden, feat_h, feat_w)
    proj = (jnp.einsum("bchw,cd->bdhw", src, params["proj_w"])
            + params["proj_b"][None, :, None, None])
    hs = transformer_stub(proj, mask, params["query_embed"], pos, params)
    logits = hs @ params["class_w"] + params["class_b"]
    h = jax.nn.relu(hs @ params["mlp_w1"] + params["mlp_b1"])
    h = jax.nn.relu(h @ params["mlp_w2"] + params["mlp_b2"])
    coords = jax.nn.sigmoid(h @ params["mlp_w3"] + params["mlp_b3"])
    out = {"pred_logits": logits[-1], "pred_lines": coords[-1]}
    if aux_loss:
        out["aux_outputs"] = [
            {"pred_logits": a, "pred_lines": b}
            for a, b in zip(logits[:-1], coords[:-1])
        ]
    return out


if __name__ == "__main__":
    # Small, module-consistent shapes.
    B = 2
    NUM_QUERIES = 8
    HIDDEN = 32           # transformer.d_model
    NUM_CLASSES = 2       # -> class_embed outputs num_classes + 1 = 3
    NUM_DEC_LAYERS = 2
    LAYER1_NUM = 0
    CHANNEL = [256, 512, 1024, 2048]
    C_IN = CHANNEL[LAYER1_NUM]
    FEAT_H = FEAT_W = 8

    key = jax.random.PRNGKey(0)
    kp, kx = jax.random.split(key)
    params = init_letr_params(kp, C_IN, HIDDEN, NUM_CLASSES, NUM_QUERIES, NUM_DEC_LAYERS)
    samples = jax.random.normal(kx, (B, 3, 32, 32), jnp.float32)  # NCHW image batch

    out = letr_forward(samples, params, c_in=C_IN, hidden=HIDDEN,
                       feat_h=FEAT_H, feat_w=FEAT_W, aux_loss=True)
    ref = letr_forward_reference(samples, params, c_in=C_IN, hidden=HIDDEN,
                                 feat_h=FEAT_H, feat_w=FEAT_W, aux_loss=True)

    jax.block_until_ready(out["pred_logits"])
    jax.block_until_ready(out["pred_lines"])
    for aux in out["aux_outputs"]:
        jax.block_until_ready(aux["pred_logits"])
        jax.block_until_ready(aux["pred_lines"])

    # Shape / range checks (module semantics).
    assert out["pred_logits"].shape == (B, NUM_QUERIES, NUM_CLASSES + 1)
    assert out["pred_lines"].shape == (B, NUM_QUERIES, 4)
    assert len(out["aux_outputs"]) == NUM_DEC_LAYERS - 1
    assert jnp.all((out["pred_lines"] >= 0.0) & (out["pred_lines"] <= 1.0))

    # Numerics vs pure-JAX reference.
    assert jnp.allclose(out["pred_logits"], ref["pred_logits"], rtol=1e-2, atol=1e-2)
    assert jnp.allclose(out["pred_lines"], ref["pred_lines"], rtol=1e-2, atol=1e-2)
    for a, r in zip(out["aux_outputs"], ref["aux_outputs"]):
        assert jnp.allclose(a["pred_logits"], r["pred_logits"], rtol=1e-2, atol=1e-2)
        assert jnp.allclose(a["pred_lines"], r["pred_lines"], rtol=1e-2, atol=1e-2)

    print("KERNEL_OK")
</pallas_src>

<mosaic_0001>
module attributes {stable_mosaic.version = 11 : i64} {
  func.func @_input_proj_kernel(%arg0: i32, %arg1: i32, %arg2: memref<1x256x128xf32, #tpu.memory_space<vmem>>, %arg3: memref<32x256xf32, #tpu.memory_space<vmem>>, %arg4: memref<32x1xf32, #tpu.memory_space<vmem>>, %arg5: memref<1x32x128xf32, #tpu.memory_space<vmem>>) attributes {dimension_semantics = [#tpu.dimension_semantics<parallel>, #tpu.dimension_semantics<parallel>], iteration_bounds = array<i64: 2, 1>, scalar_prefetch = 0 : i64, scratch_operands = 0 : i64, tpu.core_type = #tpu.core_type<tc>, window_params = [{transform_indices = @transform_0, window_bounds = array<i64: 1, 256, 128>}, {pipeline_mode = #tpu.pipeline_mode<synchronous>, transform_indices = @transform_1, window_bounds = array<i64: 32, 256>}, {pipeline_mode = #tpu.pipeline_mode<synchronous>, transform_indices = @transform_2, window_bounds = array<i64: 32, 1>}, {transform_indices = @transform_3, window_bounds = array<i64: 1, 32, 128>}]} {
    %c0 = arith.constant 0 : index
    %c0_0 = arith.constant 0 : index
    %0 = vector.load %arg3[%c0, %c0_0] : memref<32x256xf32, #tpu.memory_space<vmem>>, vector<32x256xf32>
    %c0_1 = arith.constant 0 : index
    %c0_2 = arith.constant 0 : index
    %c0_3 = arith.constant 0 : index
    %1 = vector.load %arg2[%c0_1, %c0_2, %c0_3] : memref<1x256x128xf32, #tpu.memory_space<vmem>>, vector<1x256x128xf32>
    %2 = vector.shape_cast %1 : vector<1x256x128xf32> to vector<256x128xf32>
    %cst = arith.constant dense<0.000000e+00> : vector<32x128xf32>
    %3 = tpu.matmul %0, %2, %cst {dimension_numbers = #tpu.dot_dimension_numbers<[1], [0], [0], [1], [0, 0, 1, 1], [], []>, precision = #tpu.contract_precision<fp32>} : vector<32x256xf32>, vector<256x128xf32>, vector<32x128xf32> -> vector<32x128xf32>
    %c0_4 = arith.constant 0 : index
    %c0_5 = arith.constant 0 : index
    %4 = vector.load %arg4[%c0_4, %c0_5] : memref<32x1xf32, #tpu.memory_space<vmem>>, vector<32x1xf32>
    %5 = vector.broadcast %4 : vector<32x1xf32> to vector<32x128xf32>
    %6 = arith.addf %3, %5 : vector<32x128xf32>
    %c0_6 = arith.constant 0 : index
    %c0_7 = arith.constant 0 : index
    %c0_8 = arith.constant 0 : index
    %7 = vector.load %arg5[%c0_6, %c0_7, %c0_8] : memref<1x32x128xf32, #tpu.memory_space<vmem>>, vector<1x32x128xf32>
    %8 = vector.shape_cast %7 : vector<1x32x128xf32> to vector<32x128xf32>
    %9 = vector.shape_cast %6 : vector<32x128xf32> to vector<1x32x128xf32>
    tpu.vector_store %arg5[%c0_6, %c0_7, %c0_8], %9 {strides = array<i32>} : memref<1x32x128xf32, #tpu.memory_space<vmem>>, vector<1x32x128xf32>,
    return
  }
  func.func @transform_0(%arg0: i32, %arg1: i32) -> (i32, i32, i32) {
    %c0_i32 = arith.constant 0 : i32
    %c0_i32_0 = arith.constant 0 : i32
    return %arg0, %c0_i32, %arg1 : i32, i32, i32
  }
  func.func @transform_1(%arg0: i32, %arg1: i32) -> (i32, i32) {
    %c0_i32 = arith.constant 0 : i32
    %c0_i32_0 = arith.constant 0 : i32
    %c0_i32_1 = arith.constant 0 : i32
    return %c0_i32, %c0_i32_0 : i32, i32
  }
  func.func @transform_2(%arg0: i32, %arg1: i32) -> (i32, i32) {
    %c0_i32 = arith.constant 0 : i32
    %c0_i32_0 = arith.constant 0 : i32
    %c0_i32_1 = arith.constant 0 : i32
    return %c0_i32, %c0_i32_0 : i32, i32
  }
  func.func @transform_3(%arg0: i32, %arg1: i32) -> (i32, i32, i32) {
    %c0_i32 = arith.constant 0 : i32
    %c0_i32_0 = arith.constant 0 : i32
    return %arg0, %c0_i32, %arg1 : i32, i32, i32
  }
}

</mosaic_0001>

<llo_original>
// kernel: tpu_custom_call.1
$region0: #{tpu_custom_call.1}
  #allocation0 [shape = 'u32[]', space=smem, size = 0x4, offset = 0x4, fixed_abs, tag = 'smem constant byte address 0x4 - core index']
  #allocation1 [shape = 'u32[72,128]{1,0:T(1,128)}', space=vmem, size = 0x9000, scoped, tag = 'internal scratch']
  %s0 = inlined_call_operand.hbm [shape: f32[2,256,128], index: 0, kind: input, shape index: {}]
  %s1 = inlined_call_operand.hbm [shape: f32[32,256], index: 1, kind: input, shape index: {}]
  %s2 = inlined_call_operand.vmem [shape: f32[32,1], index: 2, kind: input, shape index: {}]
  %s3 = inlined_call_operand.hbm [shape: f32[2,32,128], index: 3, kind: output, shape index: {}]
  %s4 = sld [smem:[#allocation0]]
  $region53: #{tpu_custom_call.1} parent=0
    _
  %s6 = ssub.s32 1, %s4
  %s7 = scalar_select 0, %s6, %s4
  $region1: #{tpu_custom_call.1} parent=0
    #allocation2 [shape = 'u8[262144]{0}', space=vmem, size = 0x40000, scoped, tag = 'input window, operand 0']
    #allocation3 [shape = 's32[2]{0}', space=sflag, size = 0x8, scoped, tag = 'scoped memory for tpu_custom_call.1']
    #allocation4 [shape = 's32[2]{0}', space=sflag, size = 0x8, scoped, tag = 'scoped memory for tpu_custom_call.1']
    #allocation5 [shape = 'u8[32768]{0}', space=vmem, size = 0x8000, scoped, tag = 'input window, operand 1, single buffered']
    #allocation6 [shape = 's32[1]{0}', space=sflag, size = 0x4, scoped, tag = 'scoped memory for tpu_custom_call.1']
    #allocation7 [shape = 'u8[32768]{0}', space=vmem, size = 0x8000, scoped, tag = 'output window, operand 0']
    %8 = vsyncpa [#allocation3], 0
    %s9 = scalar_lea.sflag [#allocation3], 1
    %10 = vsyncpa %s9, 0
    %11 = vsyncpa [#allocation6], 0
    %12 = vsyncpa [#allocation4], 0
    %s13 = scalar_lea.sflag [#allocation4], 1
    %14 = vsyncpa %s13, 0
    loop: start=0, step=1, limit=4
    $region2: #{tpu_custom_call.1} parent=1 // loop_pre_header
      _
    $region3: #{tpu_custom_call.1} parent=1 // loop_header
      %s16 = sphi 0, %s20
      %p17 = scmp.ge.s32.totalorder %s16, 4
      %s23 = sphi 0, %s35
      %s24 = sphi 0, %s31
      %s25 = sphi 0, %s23
      %s26 = sphi 0, %s24
      %s27 = sphi 0, %s25
      %s28 = sphi 0, %s26
      %s40 = sphi 0, %s42
      %s43 = sphi 0, %s40
      %s44 = sphi 0, %s43
      %s60 = sphi 0, %s44
      %s64 = sphi 0, %s64
      %s66 = sphi 0, %s64
      %s67 = sphi 0, %s66
      %s81 = sphi 0, %s67
      %s85 = sphi 0, %s85
      %s87 = sphi 0, %s85
      %s88 = sphi 0, %s87
      %s102 = sphi 0, %s88
      %s110 = sphi 0, %s112
      %s113 = sphi 0, %s110
      %s114 = sphi 0, %s113
      %s130 = sphi 0, %s114
    $region4: #{tpu_custom_call.1} parent=1 // loop_header_branch
      %19 = sbr.rel (%p17) target = $region8
    $region5: #{tpu_custom_call.1} parent=1 // loop_body
      %s21 = ssub.s32 %s16, 1
      %s22 = ssub.s32 %s16, 2
      %s29 = sadd.s32 1, %s24
      %p30 = scmp.ge.s32.totalorder %s29, 1
      %s31 = scalar_select %p30, 0, %s29
      %s32 = sadd.s32 1, %s23
      %s33 = scalar_select %p30, %s32, %s23
      %p34 = scmp.ge.s32.totalorder %s33, 2
      %s35 = scalar_select %p34, 0, %s33
      %s36 = ssub.s32 %s23, %s35
      %s37 = ssub.s32 %s24, %s31
      %s38 = sor.u32 %s36, %s37
      %p39 = scmp.eq.s32.totalorder %s38, 0
      %s41 = sadd.s32 %s40, 1
      %s42 = scalar_select %p39, %s40, %s41
      %p45 = pneg %p39
      %p46 = scmp.eq.s32.totalorder %s16, 1
      %p47 = por %p45, %p46
      %p48 = scmp.ne.s32.totalorder %s40, %s43
      %p49 = scmp.eq.s32.totalorder %s16, 0
      %p50 = por %p48, %p49
      %p51 = scmp.ne.s32.totalorder %s40, %s43
      %p52 = scmp.eq.s32.totalorder %s21, 1
      %p53 = por %p51, %p52
      %p54 = scmp.ne.s32.totalorder %s43, %s44
      %p55 = scmp.eq.s32.totalorder %s21, 0
      %p56 = por %p54, %p55
      %p57 = scmp.ne.s32.totalorder %s43, %s44
      %p58 = scmp.eq.s32.totalorder %s22, 1
      %p59 = por %p57, %p58
      %p61 = scmp.ne.s32.totalorder %s44, %s60
      %p62 = scmp.eq.s32.totalorder %s22, 0
      %p63 = por %p61, %p62
      %s65 = sadd.s32 %s64, 1
      %p68 = scmp.eq.s32.totalorder %s16, 1
      %p69 = scmp.ne.s32.totalorder %s64, %s66
      %p70 = scmp.eq.s32.totalorder %s16, 0
      %p71 = por %p69, %p70
      %p72 = scmp.ne.s32.totalorder %s64, %s66
      %p73 = scmp.eq.s32.totalorder %s21, 1
      %p74 = por %p72, %p73
      %p75 = scmp.ne.s32.totalorder %s66, %s67
      %p76 = scmp.eq.s32.totalorder %s21, 0
      %p77 = por %p75, %p76
      %p78 = scmp.ne.s32.totalorder %s66, %s67
      %p79 = scmp.eq.s32.totalorder %s22, 1
      %p80 = por %p78, %p79
      %p82 = scmp.ne.s32.totalorder %s67, %s81
      %p83 = scmp.eq.s32.totalorder %s22, 0
      %p84 = por %p82, %p83
      %s86 = sadd.s32 %s85, 1
      %p89 = scmp.eq.s32.totalorder %s16, 1
      %p90 = scmp.ne.s32.totalorder %s85, %s87
      %p91 = scmp.eq.s32.totalorder %s16, 0
      %p92 = por %p90, %p91
      %p93 = scmp.ne.s32.totalorder %s85, %s87
      %p94 = scmp.eq.s32.totalorder %s21, 1
      %p95 = por %p93, %p94
      %p96 = scmp.ne.s32.totalorder %s87, %s88
      %p97 = scmp.eq.s32.totalorder %s21, 0
      %p98 = por %p96, %p97
      %p99 = scmp.ne.s32.totalorder %s87, %s88
      %p100 = scmp.eq.s32.totalorder %s22, 1
      %p101 = por %p99, %p100
      %p103 = scmp.ne.s32.totalorder %s88, %s102
      %p104 = scmp.eq.s32.totalorder %s22, 0
      %p105 = por %p103, %p104
      %s106 = ssub.s32 %s23, %s35
      %s107 = ssub.s32 %s24, %s31
      %s108 = sor.u32 %s106, %s107
      %p109 = scmp.eq.s32.totalorder %s108, 0
      %s111 = sadd.s32 %s110, 1
      %s112 = scalar_select %p109, %s110, %s111
      %p115 = pneg %p109
      %p116 = scmp.eq.s32.totalorder %s16, 1
      %p117 = por %p115, %p116
      %p118 = scmp.ne.s32.totalorder %s110, %s113
      %p119 = scmp.eq.s32.totalorder %s16, 0
      %p120 = por %p118, %p119
      %p121 = scmp.ne.s32.totalorder %s110, %s113
      %p122 = scmp.eq.s32.totalorder %s21, 1
      %p123 = por %p121, %p122
      %p124 = scmp.ne.s32.totalorder %s113, %s114
      %p125 = scmp.eq.s32.totalorder %s21, 0
      %p126 = por %p124, %p125
      %p127 = scmp.ne.s32.totalorder %s113, %s114
      %p128 = scmp.eq.s32.totalorder %s22, 1
      %p129 = por %p127, %p128
      %p131 = scmp.ne.s32.totalorder %s114, %s130
      %p132 = scmp.eq.s32.totalorder %s22, 0
      %p133 = por %p131, %p132
      %p134 = scmp.le.s32.totalorder 1, %s16
      %p135 = scmp.lt.s32.totalorder %s16, 3
      %p136 = pnand %p134, %p135
      %p137 = pneg %p136
      // Predicated region
      $region9: #{tpu_custom_call.1} parent=5 // pred_check
        _
      $region10: #{tpu_custom_call.1} parent=5 // pred_check_branch
        %139 = sbr.rel (%p136) target = $region12
      $region11: #{tpu_custom_call.1} parent=5 // pred_region
        %s140 = ssub.s32 %s16, 1
        // Predicated region
        $region13: #{tpu_custom_call.1} parent=11 // pred_check
          %p141 = pneg %p77
        $region14: #{tpu_custom_call.1} parent=11 // pred_check_branch
          %143 = sbr.rel (%p141) target = $region16
        $region15: #{tpu_custom_call.1} parent=11 // pred_region
          %145 = vsyncadd [#allocation6], 0
          %s146 = sshll.u32 %s1, 4
          %s147 = int_to_ptr.hbm [resolvable:$true] %s146
          %s148 = sshll.u32 [#allocation5], 4
          %s149 = int_to_ptr.vmem [resolvable:$true] %s148
          %154 = dma.hbm_to_vmem [thread:$0]  %s147, 1024, %s149, [#allocation6], 256, 256, 16
        $region16: #{tpu_custom_call.1} parent=11 // pred_fallthru
          _
        // Predicated region
        $region17: #{tpu_custom_call.1} parent=11 // pred_check
          %p155 = pneg %p98
        $region18: #{tpu_custom_call.1} parent=11 // pred_check_branch
          %157 = sbr.rel (%p155) target = $region20
        $region19: #{tpu_custom_call.1} parent=11 // pred_region
          _
        $region20: #{tpu_custom_call.1} parent=11 // pred_fallthru
          _
      $region12: #{tpu_custom_call.1} parent=5 // pred_fallthru
        _
      %p158 = scmp.lt.s32.totalorder %s16, 2
      // Predicated region
      $region21: #{tpu_custom_call.1} parent=5 // pred_check
        %p159 = pneg %p158
      $region22: #{tpu_custom_call.1} parent=5 // pred_check_branch
        %161 = sbr.rel (%p159) target = $region24
      $region23: #{tpu_custom_call.1} parent=5 // pred_region
        // Predicated region
        $region25: #{tpu_custom_call.1} parent=23 // pred_check
          %p162 = pneg %p50
        $region26: #{tpu_custom_call.1} parent=23 // pred_check_branch
          %164 = sbr.rel (%p162) target = $region28
        $region27: #{tpu_custom_call.1} parent=23 // pred_region
          %s165 = sand.u32 %s40, 1
          %s166 = scalar_lea.sflag [#allocation3], %s165
          %s167 = sand.u32 %s40, 1
          %s168 = smul.addr %s167, 256
          %s169 = scalar_lea.vmem [#allocation2], %s168
          %171 = vsyncadd %s166, 0
          %s172 = smul.addr %s23, 32
          %s173 = sadd.s32 %s24, %s172
          %s174 = smul.addr %s173, 8
          %s175 = scalar_lea.hbm %s0, %s174
          %s176 = sshll.u32 %s175, 4
          %s177 = int_to_ptr.hbm [resolvable:$true] %s176
          %s178 = sshll.u32 %s169, 4
          %s179 = int_to_ptr.vmem [resolvable:$true] %s178
          %184 = dma.hbm_to_vmem [thread:$0]  %s177, 4096, %s179, %s166, 128, 128, 8
        $region28: #{tpu_custom_call.1} parent=23 // pred_fallthru
          _
      $region24: #{tpu_custom_call.1} parent=5 // pred_fallthru
        _
      %p185 = scmp.le.s32.totalorder 1, %s16
      %p186 = scmp.lt.s32.totalorder %s16, 3
      %p187 = pnand %p185, %p186
      %p188 = pneg %p187
      // Predicated region
      $region29: #{tpu_custom_call.1} parent=5 // pred_check
        _
      $region30: #{tpu_custom_call.1} parent=5 // pred_check_branch
        %190 = sbr.rel (%p187) target = $region32
      $region31: #{tpu_custom_call.1} parent=5 // pred_region
        %s191 = ssub.s32 %s16, 1
        %s192 = sand.u32 %s43, 1
        %s193 = scalar_lea.sflag [#allocation3], %s192
        %s194 = sand.u32 %s43, 1
        %s195 = smul.addr %s194, 256
        %s196 = scalar_lea.vmem [#allocation2], %s195
        // Predicated region
        $region33: #{tpu_custom_call.1} parent=31 // pred_check
          %p197 = pneg %p56
        $region34: #{tpu_custom_call.1} parent=31 // pred_check_branch
          %199 = sbr.rel (%p197) target = $region36
        $region35: #{tpu_custom_call.1} parent=31 // pred_region
          %201 = dma.done %s193, 4096
        $region36: #{tpu_custom_call.1} parent=31 // pred_fallthru
          _
        // Predicated region
        $region37: #{tpu_custom_call.1} parent=31 // pred_check
          %p202 = pneg %p77
        $region38: #{tpu_custom_call.1} parent=31 // pred_check_branch
          %204 = sbr.rel (%p202) target = $region40
        $region39: #{tpu_custom_call.1} parent=31 // pred_region
          %206 = dma.done [#allocation6], 1024
        $region40: #{tpu_custom_call.1} parent=31 // pred_fallthru
          _
        %s207 = sand.u32 %s43, 1
        %s208 = scalar_lea.sflag [#allocation3], %s207
        %s209 = sand.u32 %s43, 1
        %s210 = smul.addr %s209, 256
        %s211 = scalar_lea.vmem [#allocation2], %s210
        %p212 = pneg %p56
        %p213 = pneg %p53
        %p214 = pneg %p77
        %p215 = pneg %p74
        %p216 = pneg %p98
        %p217 = pneg %p95
        %p218 = pneg %p126
        %p219 = pneg %p123
        %s220 = sand.u32 %s113, 1
        %s221 = scalar_lea.sflag [#allocation4], %s220
        %s222 = sand.u32 %s113, 1
        %s223 = smul.addr %s222, 32
        %s224 = scalar_lea.vmem [#allocation7], %s223
        %v225 = vld [vmem:[#allocation5] sm:$0xff]
        %v226 = vld [vmem:[#allocation5 + $0x8] sm:$0xff]
        %v227 = vld [vmem:[#allocation5 + $0x10] sm:$0xff]
        %v228 = vld [vmem:[#allocation5 + $0x18] sm:$0xff]
        %v229 = vld [vmem:[#allocation5 + $0x20] sm:$0xff]
        %v230 = vld [vmem:[#allocation5 + $0x28] sm:$0xff]
        %v231 = vld [vmem:[#allocation5 + $0x30] sm:$0xff]
        %v232 = vld [vmem:[#allocation5 + $0x38] sm:$0xff]
        %v233 = vld [vmem:[%s196] sm:$0xff]
        %v234 = vld [vmem:[%s196 + $0x8] sm:$0xff]
        %v235 = vld [vmem:[%s196 + $0x10] sm:$0xff]
        %v236 = vld [vmem:[%s196 + $0x18] sm:$0xff]
        %v237 = vld [vmem:[%s196 + $0x20] sm:$0xff]
        %v238 = vld [vmem:[%s196 + $0x28] sm:$0xff]
        %v239 = vld [vmem:[%s196 + $0x30] sm:$0xff]
        %v240 = vld [vmem:[%s196 + $0x38] sm:$0xff]
        %v241 = vld [vmem:[%s196 + $0x40] sm:$0xff]
        %v242 = vld [vmem:[%s196 + $0x48] sm:$0xff]
        %v243 = vld [vmem:[%s196 + $0x50] sm:$0xff]
        %v244 = vld [vmem:[%s196 + $0x58] sm:$0xff]
        %v245 = vld [vmem:[%s196 + $0x60] sm:$0xff]
        %v246 = vld [vmem:[%s196 + $0x68] sm:$0xff]
        %v247 = vld [vmem:[%s196 + $0x70] sm:$0xff]
        %v248 = vld [vmem:[%s196 + $0x78] sm:$0xff]
        %v249 = vld [vmem:[%s196 + $0x80] sm:$0xff]
        %v250 = vld [vmem:[%s196 + $0x88] sm:$0xff]
        %v251 = vld [vmem:[%s196 + $0x90] sm:$0xff]
        %v252 = vld [vmem:[%s196 + $0x98] sm:$0xff]
        %v253 = vld [vmem:[%s196 + $0xa0] sm:$0xff]
        %v254 = vld [vmem:[%s196 + $0xa8] sm:$0xff]
        %v255 = vld [vmem:[%s196 + $0xb0] sm:$0xff]
        %v256 = vld [vmem:[%s196 + $0xb8] sm:$0xff]
        %v257 = vld [vmem:[%s196 + $0xc0] sm:$0xff]
        %v258 = vld [vmem:[%s196 + $0xc8] sm:$0xff]
        %v259 = vld [vmem:[%s196 + $0xd0] sm:$0xff]
        %v260 = vld [vmem:[%s196 + $0xd8] sm:$0xff]
        %v261 = vld [vmem:[%s196 + $0xe0] sm:$0xff]
        %v262 = vld [vmem:[%s196 + $0xe8] sm:$0xff]
        %v263 = vld [vmem:[%s196 + $0xf0] sm:$0xff]
        %v264 = vld [vmem:[%s196 + $0xf8] sm:$0xff]
        %v265 = vld [vmem:[%s2] sm:$0xff]
        %v266 = vld [vmem:[%s2 + $0x8] sm:$0xff]
        %v267 = vld [vmem:[%s2 + $0x10] sm:$0xff]
        %v268 = vld [vmem:[%s2 + $0x18] sm:$0xff]
        %270 = vset.pattern.permute.xlu0 0
        %271 = vperm.xlu0 %270, %v265
        %v272 = vpop.permute.xlu0 %271
        %275 = vset.pattern.permute.xlu0 0
        %276 = vperm.xlu0 %275, %v266
        %v277 = vpop.permute.xlu0 %276
        %280 = vset.pattern.permute.xlu0 0
        %281 = vperm.xlu0 %280, %v267
        %v282 = vpop.permute.xlu0 %281
        %285 = vset.pattern.permute.xlu0 0
        %286 = vperm.xlu0 %285, %v268
        %v287 = vpop.permute.xlu0 %286
        %v289 = vand.u32 %v248, 4294901760
        %290 = vmatpush.msra.mxu0 %v289
        %v291 = vand.u32 %v247, 4294901760
        %292 = vmatpush.msra.mxu0 %v291
        %v293 = vand.u32 %v246, 4294901760
        %294 = vmatpush.msra.mxu0 %v293
        %v295 = vand.u32 %v245, 4294901760
        %296 = vmatpush.msra.mxu0 %v295
        %v297 = vand.u32 %v244, 4294901760
        %298 = vmatpush.msra.mxu0 %v297
        %v299 = vand.u32 %v243, 4294901760
        %300 = vmatpush.msra.mxu0 %v299
        %v301 = vand.u32 %v242, 4294901760
        %302 = vmatpush.msra.mxu0 %v301
        %v303 = vand.u32 %v241, 4294901760
        %304 = vmatpush.msra.mxu0 %v303
        %v305 = vand.u32 %v240, 4294901760
        %306 = vmatpush.msra.mxu0 %v305
        %v307 = vand.u32 %v239, 4294901760
        %308 = vmatpush.msra.mxu0 %v307
        %v309 = vand.u32 %v238, 4294901760
        %310 = vmatpush.msra.mxu0 %v309
        %v311 = vand.u32 %v237, 4294901760
        %312 = vmatpush.msra.mxu0 %v311
        %v313 = vand.u32 %v236, 4294901760
        %314 = vmatpush.msra.mxu0 %v313
        %v315 = vand.u32 %v235, 4294901760
        %316 = vmatpush.msra.mxu0 %v315
        %v317 = vand.u32 %v234, 4294901760
        %318 = vmatpush.msra.mxu0 %v317
        %v319 = vand.u32 %v233, 4294901760
        %320 = vmatpush.msra.mxu0 %v319
        %v321 = vand.u32 %v225, 4294901760
        %v322 = vsub.f32 %v225, %v321
        %v323 = vand.u32 %v322, 4294901760
        %v324 = vsub.f32 %v322, %v323
        %v325 = vand.u32 %v324, 4294901760
        %326 = vmatmul.f32.gmra.mxu0 %v325
        %v327 = vpop.f32.mrf.mxu0
        %v328 = vadd.f32 %v272, %v327
        %v329 = vand.u32 %v227, 4294901760
        %v330 = vsub.f32 %v227, %v329
        %v331 = vand.u32 %v330, 4294901760
        %v332 = vsub.f32 %v330, %v331
        %v333 = vand.u32 %v332, 4294901760
        %334 = vmatmul.f32.gmra.mxu0 %v333
        %v335 = vpop.f32.mrf.mxu0
        %v336 = vadd.f32 %v277, %v335
        %v337 = vand.u32 %v229, 4294901760
        %v338 = vsub.f32 %v229, %v337
        %v339 = vand.u32 %v338, 4294901760
        %v340 = vsub.f32 %v338, %v339
        %v341 = vand.u32 %v340, 4294901760
        %342 = vmatmul.f32.gmra.mxu0 %v341
        %v343 = vpop.f32.mrf.mxu0
        %v344 = vadd.f32 %v282, %v343
        %v345 = vand.u32 %v231, 4294901760
        %v346 = vsub.f32 %v231, %v345
        %v347 = vand.u32 %v346, 4294901760
        %v348 = vsub.f32 %v346, %v347
        %v349 = vand.u32 %v348, 4294901760
        %350 = vmatmul.f32.gmra.mxu0 %v349
        %v351 = vpop.f32.mrf.mxu0
        %v352 = vadd.f32 %v287, %v351
        %353 = vdwg.mxu0
        %v354 = vand.u32 %v248, 4294901760
        %v355 = vsub.f32 %v248, %v354
        %v356 = vand.u32 %v355, 4294901760
        %v357 = vsub.f32 %v355, %v356
        %v358 = vand.u32 %v357, 4294901760
        %359 = vmatpush.msra.mxu0 %v358
        %v360 = vand.u32 %v247, 4294901760
        %v361 = vsub.f32 %v247, %v360
        %v362 = vand.u32 %v361, 4294901760
        %v363 = vsub.f32 %v361, %v362
        %v364 = vand.u32 %v363, 4294901760
        %365 = vmatpush.msra.mxu0 %v364
        %v366 = vand.u32 %v246, 4294901760
        %v367 = vsub.f32 %v246, %v366
        %v368 = vand.u32 %v367, 4294901760
        %v369 = vsub.f32 %v367, %v368
        %v370 = vand.u32 %v369, 4294901760
        %371 = vmatpush.msra.mxu0 %v370
        %v372 = vand.u32 %v245, 4294901760
        %v373 = vsub.f32 %v245, %v372
        %v374 = vand.u32 %v373, 4294901760
        %v375 = vsub.f32 %v373, %v374
        %v376 = vand.u32 %v375, 4294901760
        %377 = vmatpush.msra.mxu0 %v376
        %v378 = vand.u32 %v244, 4294901760
        %v379 = vsub.f32 %v244, %v378
        %v380 = vand.u32 %v379, 4294901760
        %v381 = vsub.f32 %v379, %v380
        %v382 = vand.u32 %v381, 4294901760
        %383 = vmatpush.msra.mxu0 %v382
        %v384 = vand.u32 %v243, 4294901760
        %v385 = vsub.f32 %v243, %v384
        %v386 = vand.u32 %v385, 4294901760
        %v387 = vsub.f32 %v385, %v386
        %v388 = vand.u32 %v387, 4294901760
        %389 = vmatpush.msra.mxu0 %v388
        %v390 = vand.u32 %v242, 4294901760
        %v391 = vsub.f32 %v242, %v390
        %v392 = vand.u32 %v391, 4294901760
        %v393 = vsub.f32 %v391, %v392
        %v394 = vand.u32 %v393, 4294901760
        %395 = vmatpush.msra.mxu0 %v394
        %v396 = vand.u32 %v241, 4294901760
        %v397 = vsub.f32 %v241, %v396
        %v398 = vand.u32 %v397, 4294901760
        %v399 = vsub.f32 %v397, %v398
        %v400 = vand.u32 %v399, 4294901760
        %401 = vmatpush.msra.mxu0 %v400
        %v402 = vand.u32 %v240, 4294901760
        %v403 = vsub.f32 %v240, %v402
        %v404 = vand.u32 %v403, 4294901760
        %v405 = vsub.f32 %v403, %v404
        %v406 = vand.u32 %v405, 4294901760
        %407 = vmatpush.msra.mxu0 %v406
        %v408 = vand.u32 %v239, 4294901760
        %v409 = vsub.f32 %v239, %v408
        %v410 = vand.u32 %v409, 4294901760
        %v411 = vsub.f32 %v409, %v410
        %v412 = vand.u32 %v411, 4294901760
        %413 = vmatpush.msra.mxu0 %v412
        %v414 = vand.u32 %v238, 4294901760
        %v415 = vsub.f32 %v238, %v414
        %v416 = vand.u32 %v415, 4294901760
        %v417 = vsub.f32 %v415, %v416
        %v418 = vand.u32 %v417, 4294901760
        %419 = vmatpush.msra.mxu0 %v418
        %v420 = vand.u32 %v237, 4294901760
        %v421 = vsub.f32 %v237, %v420
        %v422 = vand.u32 %v421, 4294901760
        %v423 = vsub.f32 %v421, %v422
        %v424 = vand.u32 %v423, 4294901760
        %425 = vmatpush.msra.mxu0 %v424
        %v426 = vand.u32 %v236, 4294901760
        %v427 = vsub.f32 %v236, %v426
        %v428 = vand.u32 %v427, 4294901760
        %v429 = vsub.f32 %v427, %v428
        %v430 = vand.u32 %v429, 4294901760
        %431 = vmatpush.msra.mxu0 %v430
        %v432 = vand.u32 %v235, 4294901760
        %v433 = vsub.f32 %v235, %v432
        %v434 = vand.u32 %v433, 4294901760
        %v435 = vsub.f32 %v433, %v434
        %v436 = vand.u32 %v435, 4294901760
        %437 = vmatpush.msra.mxu0 %v436
        %v438 = vand.u32 %v234, 4294901760
        %v439 = vsub.f32 %v234, %v438
        %v440 = vand.u32 %v439, 4294901760
        %v441 = vsub.f32 %v439, %v440
        %v442 = vand.u32 %v441, 4294901760
        %443 = vmatpush.msra.mxu0 %v442
        %v444 = vand.u32 %v233, 4294901760
        %v445 = vsub.f32 %v233, %v444
        %v446 = vand.u32 %v445, 4294901760
        %v447 = vsub.f32 %v445, %v446
        %v448 = vand.u32 %v447, 4294901760
        %449 = vmatpush.msra.mxu0 %v448
        %v450 = vand.u32 %v225, 4294901760
        %451 = vmatmul.f32.gmra.mxu0 %v450
        %v452 = vpop.f32.mrf.mxu0
        %v453 = vadd.f32 %v328, %v452
        %v454 = vand.u32 %v227, 4294901760
        %455 = vmatmul.f32.gmra.mxu0 %v454
        %v456 = vpop.f32.mrf.mxu0
        %v457 = vadd.f32 %v336, %v456
        %v458 = vand.u32 %v229, 4294901760
        %459 = vmatmul.f32.gmra.mxu0 %v458
        %v460 = vpop.f32.mrf.mxu0
        %v461 = vadd.f32 %v344, %v460
        %v462 = vand.u32 %v231, 4294901760
        %463 = vmatmul.f32.gmra.mxu0 %v462
        %v464 = vpop.f32.mrf.mxu0
        %v465 = vadd.f32 %v352, %v464
        %466 = vdwg.mxu0
        %v467 = vand.u32 %v248, 4294901760
        %v468 = vsub.f32 %v248, %v467
        %469 = vmatpush.msra.mxu0 %v468
        %v470 = vand.u32 %v247, 4294901760
        %v471 = vsub.f32 %v247, %v470
        %472 = vmatpush.msra.mxu0 %v471
        %v473 = vand.u32 %v246, 4294901760
        %v474 = vsub.f32 %v246, %v473
        %475 = vmatpush.msra.mxu0 %v474
        %v476 = vand.u32 %v245, 4294901760
        %v477 = vsub.f32 %v245, %v476
        %478 = vmatpush.msra.mxu0 %v477
        %v479 = vand.u32 %v244, 4294901760
        %v480 = vsub.f32 %v244, %v479
        %481 = vmatpush.msra.mxu0 %v480
        %v482 = vand.u32 %v243, 4294901760
        %v483 = vsub.f32 %v243, %v482
        %484 = vmatpush.msra.mxu0 %v483
        %v485 = vand.u32 %v242, 4294901760
        %v486 = vsub.f32 %v242, %v485
        %487 = vmatpush.msra.mxu0 %v486
        %v488 = vand.u32 %v241, 4294901760
        %v489 = vsub.f32 %v241, %v488
        %490 = vmatpush.msra.mxu0 %v489
        %v491 = vand.u32 %v240, 4294901760
        %v492 = vsub.f32 %v240, %v491
        %493 = vmatpush.msra.mxu0 %v492
        %v494 = vand.u32 %v239, 4294901760
        %v495 = vsub.f32 %v239, %v494
        %496 = vmatpush.msra.mxu0 %v495
        %v497 = vand.u32 %v238, 4294901760
        %v498 = vsub.f32 %v238, %v497
        %499 = vmatpush.msra.mxu0 %v498
        %v500 = vand.u32 %v237, 4294901760
        %v501 = vsub.f32 %v237, %v500
        %502 = vmatpush.msra.mxu0 %v501
        %v503 = vand.u32 %v236, 4294901760
        %v504 = vsub.f32 %v236, %v503
        %505 = vmatpush.msra.mxu0 %v504
        %v506 = vand.u32 %v235, 4294901760
        %v507 = vsub.f32 %v235, %v506
        %508 = vmatpush.msra.mxu0 %v507
        %v509 = vand.u32 %v234, 4294901760
        %v510 = vsub.f32 %v234, %v509
        %511 = vmatpush.msra.mxu0 %v510
        %v512 = vand.u32 %v233, 4294901760
        %v513 = vsub.f32 %v233, %v512
        %514 = vmatpush.msra.mxu0 %v513
        %v515 = vand.u32 %v225, 4294901760
        %v516 = vsub.f32 %v225, %v515
        %517 = vmatmul.f32.gmra.mxu0 %v516
        %v518 = vpop.f32.mrf.mxu0
        %v519 = vadd.f32 %v453, %v518
        %v520 = vand.u32 %v227, 4294901760
        %v521 = vsub.f32 %v227, %v520
        %522 = vmatmul.f32.gmra.mxu0 %v521
        %v523 = vpop.f32.mrf.mxu0
        %v524 = vadd.f32 %v457, %v523
        %v525 = vand.u32 %v229, 4294901760
        %v526 = vsub.f32 %v229, %v525
        %527 = vmatmul.f32.gmra.mxu0 %v526
        %v528 = vpop.f32.mrf.mxu0
        %v529 = vadd.f32 %v461, %v528
        %v530 = vand.u32 %v231, 4294901760
        %v531 = vsub.f32 %v231, %v530
        %532 = vmatmul.f32.gmra.mxu0 %v531
        %v533 = vpop.f32.mrf.mxu0
        %v534 = vadd.f32 %v465, %v533
        %535 = vdwg.mxu0
        %v536 = vand.u32 %v248, 4294901760
        %537 = vmatpush.msra.mxu0 %v536
        %v538 = vand.u32 %v247, 4294901760
        %539 = vmatpush.msra.mxu0 %v538
        %v540 = vand.u32 %v246, 4294901760
        %541 = vmatpush.msra.mxu0 %v540
        %v542 = vand.u32 %v245, 4294901760
        %543 = vmatpush.msra.mxu0 %v542
        %v544 = vand.u32 %v244, 4294901760
        %545 = vmatpush.msra.mxu0 %v544
        %v546 = vand.u32 %v243, 4294901760
        %547 = vmatpush.msra.mxu0 %v546
        %v548 = vand.u32 %v242, 4294901760
        %549 = vmatpush.msra.mxu0 %v548
        %v550 = vand.u32 %v241, 4294901760
        %551 = vmatpush.msra.mxu0 %v550
        %v552 = vand.u32 %v240, 4294901760
        %553 = vmatpush.msra.mxu0 %v552
        %v554 = vand.u32 %v239, 4294901760
        %555 = vmatpush.msra.mxu0 %v554
        %v556 = vand.u32 %v238, 4294901760
        %557 = vmatpush.msra.mxu0 %v556
        %v558 = vand.u32 %v237, 4294901760
        %559 = vmatpush.msra.mxu0 %v558
        %v560 = vand.u32 %v236, 4294901760
        %561 = vmatpush.msra.mxu0 %v560
        %v562 = vand.u32 %v235, 4294901760
        %563 = vmatpush.msra.mxu0 %v562
        %v564 = vand.u32 %v234, 4294901760
        %565 = vmatpush.msra.mxu0 %v564
        %v566 = vand.u32 %v233, 4294901760
        %567 = vmatpush.msra.mxu0 %v566
        %v568 = vand.u32 %v225, 4294901760
        %v569 = vsub.f32 %v225, %v568
        %v570 = vand.u32 %v569, 4294901760
        %571 = vmatmul.f32.gmra.mxu0 %v570
        %v572 = vpop.f32.mrf.mxu0
        %v573 = vadd.f32 %v519, %v572
        %v574 = vand.u32 %v227, 4294901760
        %v575 = vsub.f32 %v227, %v574
        %v576 = vand.u32 %v575, 4294901760
        %577 = vmatmul.f32.gmra.mxu0 %v576
        %v578 = vpop.f32.mrf.mxu0
        %v579 = vadd.f32 %v524, %v578
        %v580 = vand.u32 %v229, 4294901760
        %v581 = vsub.f32 %v229, %v580
        %v582 = vand.u32 %v581, 4294901760
        %583 = vmatmul.f32.gmra.mxu0 %v582
        %v584 = vpop.f32.mrf.mxu0
        %v585 = vadd.f32 %v529, %v584
        %v586 = vand.u32 %v231, 4294901760
        %v587 = vsub.f32 %v231, %v586
        %v588 = vand.u32 %v587, 4294901760
        %589 = vmatmul.f32.gmra.mxu0 %v588
        %v590 = vpop.f32.mrf.mxu0
        %v591 = vadd.f32 %v534, %v590
        %592 = vdwg.mxu0
        %v593 = vand.u32 %v248, 4294901760
        %v594 = vsub.f32 %v248, %v593
        %v595 = vand.u32 %v594, 4294901760
        %596 = vmatpush.msra.mxu0 %v595
        %v597 = vand.u32 %v247, 4294901760
        %v598 = vsub.f32 %v247, %v597
        %v599 = vand.u32 %v598, 4294901760
        %600 = vmatpush.msra.mxu0 %v599
        %v601 = vand.u32 %v246, 4294901760
        %v602 = vsub.f32 %v246, %v601
        %v603 = vand.u32 %v602, 4294901760
        %604 = vmatpush.msra.mxu0 %v603
        %v605 = vand.u32 %v245, 4294901760
        %v606 = vsub.f32 %v245, %v605
        %v607 = vand.u32 %v606, 4294901760
        %608 = vmatpush.msra.mxu0 %v607
        %v609 = vand.u32 %v244, 4294901760
        %v610 = vsub.f32 %v244, %v609
        %v611 = vand.u32 %v610, 4294901760
        %612 = vmatpush.msra.mxu0 %v611
        %v613 = vand.u32 %v243, 4294901760
        %v614 = vsub.f32 %v243, %v613
        %v615 = vand.u32 %v614, 4294901760
        %616 = vmatpush.msra.mxu0 %v615
        %v617 = vand.u32 %v242, 4294901760
        %v618 = vsub.f32 %v242, %v617
        %v619 = vand.u32 %v618, 4294901760
        %620 = vmatpush.msra.mxu0 %v619
        %v621 = vand.u32 %v241, 4294901760
        %v622 = vsub.f32 %v241, %v621
        %v623 = vand.u32 %v622, 4294901760
        %624 = vmatpush.msra.mxu0 %v623
        %v625 = vand.u32 %v240, 4294901760
        %v626 = vsub.f32 %v240, %v625
        %v627 = vand.u32 %v626, 4294901760
        %628 = vmatpush.msra.mxu0 %v627
        %v629 = vand.u32 %v239, 4294901760
        %v630 = vsub.f32 %v239, %v629
        %v631 = vand.u32 %v630, 4294901760
        %632 = vmatpush.msra.mxu0 %v631
        %v633 = vand.u32 %v238, 4294901760
        %v634 = vsub.f32 %v238, %v633
        %v635 = vand.u32 %v634, 4294901760
        %636 = vmatpush.msra.mxu0 %v635
        %v637 = vand.u32 %v237, 4294901760
        %v638 = vsub.f32 %v237, %v637
        %v639 = vand.u32 %v638, 4294901760
        %640 = vmatpush.msra.mxu0 %v639
        %v641 = vand.u32 %v236, 4294901760
        %v642 = vsub.f32 %v236, %v641
        %v643 = vand.u32 %v642, 4294901760
        %644 = vmatpush.msra.mxu0 %v643
        %v645 = vand.u32 %v235, 4294901760
        %v646 = vsub.f32 %v235, %v645
        %v647 = vand.u32 %v646, 4294901760
        %648 = vmatpush.msra.mxu0 %v647
        %v649 = vand.u32 %v234, 4294901760
        %v650 = vsub.f32 %v234, %v649
        %v651 = vand.u32 %v650, 4294901760
        %652 = vmatpush.msra.mxu0 %v651
        %v653 = vand.u32 %v233, 4294901760
        %v654 = vsub.f32 %v233, %v653
        %v655 = vand.u32 %v654, 4294901760
        %656 = vmatpush.msra.mxu0 %v655
        %v657 = vand.u32 %v225, 4294901760
        %658 = vmatmul.f32.gmra.mxu0 %v657
        %v659 = vpop.f32.mrf.mxu0
        %v660 = vadd.f32 %v573, %v659
        %v661 = vand.u32 %v227, 4294901760
        %662 = vmatmul.f32.gmra.mxu0 %v661
        %v663 = vpop.f32.mrf.mxu0
        %v664 = vadd.f32 %v579, %v663
        %v665 = vand.u32 %v229, 4294901760
        %666 = vmatmul.f32.gmra.mxu0 %v665
        %v667 = vpop.f32.mrf.mxu0
        %v668 = vadd.f32 %v585, %v667
        %v669 = vand.u32 %v231, 4294901760
        %670 = vmatmul.f32.gmra.mxu0 %v669
        %v671 = vpop.f32.mrf.mxu0
        %v672 = vadd.f32 %v591, %v671
        %673 = vdwg.mxu0
        %v674 = vand.u32 %v248, 4294901760
        %675 = vmatpush.msra.mxu0 %v674
        %v676 = vand.u32 %v247, 4294901760
        %677 = vmatpush.msra.mxu0 %v676
        %v678 = vand.u32 %v246, 4294901760
        %679 = vmatpush.msra.mxu0 %v678
        %v680 = vand.u32 %v245, 4294901760
        %681 = vmatpush.msra.mxu0 %v680
        %v682 = vand.u32 %v244, 4294901760
        %683 = vmatpush.msra.mxu0 %v682
        %v684 = vand.u32 %v243, 4294901760
        %685 = vmatpush.msra.mxu0 %v684
        %v686 = vand.u32 %v242, 4294901760
        %687 = vmatpush.msra.mxu0 %v686
        %v688 = vand.u32 %v241, 4294901760
        %689 = vmatpush.msra.mxu0 %v688
        %v690 = vand.u32 %v240, 4294901760
        %691 = vmatpush.msra.mxu0 %v690
        %v692 = vand.u32 %v239, 4294901760
        %693 = vmatpush.msra.mxu0 %v692
        %v694 = vand.u32 %v238, 4294901760
        %695 = vmatpush.msra.mxu0 %v694
        %v696 = vand.u32 %v237, 4294901760
        %697 = vmatpush.msra.mxu0 %v696
        %v698 = vand.u32 %v236, 4294901760
        %699 = vmatpush.msra.mxu0 %v698
        %v700 = vand.u32 %v235, 4294901760
        %701 = vmatpush.msra.mxu0 %v700
        %v702 = vand.u32 %v234, 4294901760
        %703 = vmatpush.msra.mxu0 %v702
        %v704 = vand.u32 %v233, 4294901760
        %705 = vmatpush.msra.mxu0 %v704
        %v706 = vand.u32 %v225, 4294901760
        %707 = vmatmul.f32.gmra.mxu0 %v706
        %v708 = vpop.f32.mrf.mxu0
        %v709 = vadd.f32 %v660, %v708
        %v710 = vand.u32 %v227, 4294901760
        %711 = vmatmul.f32.gmra.mxu0 %v710
        %v712 = vpop.f32.mrf.mxu0
        %v713 = vadd.f32 %v664, %v712
        %v714 = vand.u32 %v229, 4294901760
        %715 = vmatmul.f32.gmra.mxu0 %v714
        %v716 = vpop.f32.mrf.mxu0
        %v717 = vadd.f32 %v668, %v716
        %v718 = vand.u32 %v231, 4294901760
        %719 = vmatmul.f32.gmra.mxu0 %v718
        %v720 = vpop.f32.mrf.mxu0
        %v721 = vadd.f32 %v672, %v720
        %722 = vdwg.mxu0
        %v723 = vand.u32 %v264, 4294901760
        %724 = vmatpush.msra.mxu0 %v723
        %v725 = vand.u32 %v263, 4294901760
        %726 = vmatpush.msra.mxu0 %v725
        %v727 = vand.u32 %v262, 4294901760
        %728 = vmatpush.msra.mxu0 %v727
        %v729 = vand.u32 %v261, 4294901760
        %730 = vmatpush.msra.mxu0 %v729
        %v731 = vand.u32 %v260, 4294901760
        %732 = vmatpush.msra.mxu0 %v731
        %v733 = vand.u32 %v259, 4294901760
        %734 = vmatpush.msra.mxu0 %v733
        %v735 = vand.u32 %v258, 4294901760
        %736 = vmatpush.msra.mxu0 %v735
        %v737 = vand.u32 %v257, 4294901760
        %738 = vmatpush.msra.mxu0 %v737
        %v739 = vand.u32 %v256, 4294901760
        %740 = vmatpush.msra.mxu0 %v739
        %v741 = vand.u32 %v255, 4294901760
        %742 = vmatpush.msra.mxu0 %v741
        %v743 = vand.u32 %v254, 4294901760
        %744 = vmatpush.msra.mxu0 %v743
        %v745 = vand.u32 %v253, 4294901760
        %746 = vmatpush.msra.mxu0 %v745
        %v747 = vand.u32 %v252, 4294901760
        %748 = vmatpush.msra.mxu0 %v747
        %v749 = vand.u32 %v251, 4294901760
        %750 = vmatpush.msra.mxu0 %v749
        %v751 = vand.u32 %v250, 4294901760
        %752 = vmatpush.msra.mxu0 %v751
        %v753 = vand.u32 %v249, 4294901760
        %754 = vmatpush.msra.mxu0 %v753
        %v755 = vand.u32 %v226, 4294901760
        %v756 = vsub.f32 %v226, %v755
        %v757 = vand.u32 %v756, 4294901760
        %v758 = vsub.f32 %v756, %v757
        %v759 = vand.u32 %v758, 4294901760
        %760 = vmatmul.f32.gmra.mxu0 %v759
        %v761 = vpop.f32.mrf.mxu0
        %v762 = vadd.f32 %v709, %v761
        %v763 = vand.u32 %v228, 4294901760
        %v764 = vsub.f32 %v228, %v763
        %v765 = vand.u32 %v764, 4294901760
        %v766 = vsub.f32 %v764, %v765
        %v767 = vand.u32 %v766, 4294901760
        %768 = vmatmul.f32.gmra.mxu0 %v767
        %v769 = vpop.f32.mrf.mxu0
        %v770 = vadd.f32 %v713, %v769
        %v771 = vand.u32 %v230, 4294901760
        %v772 = vsub.f32 %v230, %v771
        %v773 = vand.u32 %v772, 4294901760
        %v774 = vsub.f32 %v772, %v773
        %v775 = vand.u32 %v774, 4294901760
        %776 = vmatmul.f32.gmra.mxu0 %v775
        %v777 = vpop.f32.mrf.mxu0
        %v778 = vadd.f32 %v717, %v777
        %v779 = vand.u32 %v232, 4294901760
        %v780 = vsub.f32 %v232, %v779
        %v781 = vand.u32 %v780, 4294901760
        %v782 = vsub.f32 %v780, %v781
        %v783 = vand.u32 %v782, 4294901760
        %784 = vmatmul.f32.gmra.mxu0 %v783
        %v785 = vpop.f32.mrf.mxu0
        %v786 = vadd.f32 %v721, %v785
        %787 = vdwg.mxu0
        %v788 = vand.u32 %v264, 4294901760
        %v789 = vsub.f32 %v264, %v788
        %v790 = vand.u32 %v789, 4294901760
        %v791 = vsub.f32 %v789, %v790
        %v792 = vand.u32 %v791, 4294901760
        %793 = vmatpush.msra.mxu0 %v792
        %v794 = vand.u32 %v263, 4294901760
        %v795 = vsub.f32 %v263, %v794
        %v796 = vand.u32 %v795, 4294901760
        %v797 = vsub.f32 %v795, %v796
        %v798 = vand.u32 %v797, 4294901760
        %799 = vmatpush.msra.mxu0 %v798
        %v800 = vand.u32 %v262, 4294901760
        %v801 = vsub.f32 %v262, %v800
        %v802 = vand.u32 %v801, 4294901760
        %v803 = vsub.f32 %v801, %v802
        %v804 = vand.u32 %v803, 4294901760
        %805 = vmatpush.msra.mxu0 %v804
        %v806 = vand.u32 %v261, 4294901760
        %v807 = vsub.f32 %v261, %v806
        %v808 = vand.u32 %v807, 4294901760
        %v809 = vsub.f32 %v807, %v808
        %v810 = vand.u32 %v809, 4294901760
        %811 = vmatpush.msra.mxu0 %v810
        %v812 = vand.u32 %v260, 4294901760
        %v813 = vsub.f32 %v260, %v812
        %v814 = vand.u32 %v813, 4294901760
        %v815 = vsub.f32 %v813, %v814
        %v816 = vand.u32 %v815, 4294901760
        %817 = vmatpush.msra.mxu0 %v816
        %v818 = vand.u32 %v259, 4294901760
        %v819 = vsub.f32 %v259, %v818
        %v820 = vand.u32 %v819, 4294901760
        %v821 = vsub.f32 %v819, %v820
        %v822 = vand.u32 %v821, 4294901760
        %823 = vmatpush.msra.mxu0 %v822
        %v824 = vand.u32 %v258, 4294901760
        %v825 = vsub.f32 %v258, %v824
        %v826 = vand.u32 %v825, 4294901760
        %v827 = vsub.f32 %v825, %v826
        %v828 = vand.u32 %v827, 4294901760
        %829 = vmatpush.msra.mxu0 %v828
        %v830 = vand.u32 %v257, 4294901760
        %v831 = vsub.f32 %v257, %v830
        %v832 = vand.u32 %v831, 4294901760
        %v833 = vsub.f32 %v831, %v832
        %v834 = vand.u32 %v833, 4294901760
        %835 = vmatpush.msra.mxu0 %v834
        %v836 = vand.u32 %v256, 4294901760
        %v837 = vsub.f32 %v256, %v836
        %v838 = vand.u32 %v837, 4294901760
        %v839 = vsub.f32 %v837, %v838
        %v840 = vand.u32 %v839, 4294901760
        %841 = vmatpush.msra.mxu0 %v840
        %v842 = vand.u32 %v255, 4294901760
        %v843 = vsub.f32 %v255, %v842
        %v844 = vand.u32 %v843, 4294901760
        %v845 = vsub.f32 %v843, %v844
        %v846 = vand.u32 %v845, 4294901760
        %847 = vmatpush.msra.mxu0 %v846
        %v848 = vand.u32 %v254, 4294901760
        %v849 = vsub.f32 %v254, %v848
        %v850 = vand.u32 %v849, 4294901760
        %v851 = vsub.f32 %v849, %v850
        %v852 = vand.u32 %v851, 4294901760
        %853 = vmatpush.msra.mxu0 %v852
        %v854 = vand.u32 %v253, 4294901760
        %v855 = vsub.f32 %v253, %v854
        %v856 = vand.u32 %v855, 4294901760
        %v857 = vsub.f32 %v855, %v856
        %v858 = vand.u32 %v857, 4294901760
        %859 = vmatpush.msra.mxu0 %v858
        %v860 = vand.u32 %v252, 4294901760
        %v861 = vsub.f32 %v252, %v860
        %v862 = vand.u32 %v861, 4294901760
        %v863 = vsub.f32 %v861, %v862
        %v864 = vand.u32 %v863, 4294901760
        %865 = vmatpush.msra.mxu0 %v864
        %v866 = vand.u32 %v251, 4294901760
        %v867 = vsub.f32 %v251, %v866
        %v868 = vand.u32 %v867, 4294901760
        %v869 = vsub.f32 %v867, %v868
        %v870 = vand.u32 %v869, 4294901760
        %871 = vmatpush.msra.mxu0 %v870
        %v872 = vand.u32 %v250, 4294901760
        %v873 = vsub.f32 %v250, %v872
        %v874 = vand.u32 %v873, 4294901760
        %v875 = vsub.f32 %v873, %v874
        %v876 = vand.u32 %v875, 4294901760
        %877 = vmatpush.msra.mxu0 %v876
        %v878 = vand.u32 %v249, 4294901760
        %v879 = vsub.f32 %v249, %v878
        %v880 = vand.u32 %v879, 4294901760
        %v881 = vsub.f32 %v879, %v880
        %v882 = vand.u32 %v881, 4294901760
        %883 = vmatpush.msra.mxu0 %v882
        %v884 = vand.u32 %v226, 4294901760
        %885 = vmatmul.f32.gmra.mxu0 %v884
        %v886 = vpop.f32.mrf.mxu0
        %v887 = vadd.f32 %v762, %v886
        %v888 = vand.u32 %v228, 4294901760
        %889 = vmatmul.f32.gmra.mxu0 %v888
        %v890 = vpop.f32.mrf.mxu0
        %v891 = vadd.f32 %v770, %v890
        %v892 = vand.u32 %v230, 4294901760
        %893 = vmatmul.f32.gmra.mxu0 %v892
        %v894 = vpop.f32.mrf.mxu0
        %v895 = vadd.f32 %v778, %v894
        %v896 = vand.u32 %v232, 4294901760
        %897 = vmatmul.f32.gmra.mxu0 %v896
        %v898 = vpop.f32.mrf.mxu0
        %v899 = vadd.f32 %v786, %v898
        %900 = vdwg.mxu0
        %v901 = vand.u32 %v264, 4294901760
        %v902 = vsub.f32 %v264, %v901
        %903 = vmatpush.msra.mxu0 %v902
        %v904 = vand.u32 %v263, 4294901760
        %v905 = vsub.f32 %v263, %v904
        %906 = vmatpush.msra.mxu0 %v905
        %v907 = vand.u32 %v262, 4294901760
        %v908 = vsub.f32 %v262, %v907
        %909 = vmatpush.msra.mxu0 %v908
        %v910 = vand.u32 %v261, 4294901760
        %v911 = vsub.f32 %v261, %v910
        %912 = vmatpush.msra.mxu0 %v911
        %v913 = vand.u32 %v260, 4294901760
        %v914 = vsub.f32 %v260, %v913
        %915 = vmatpush.msra.mxu0 %v914
        %v916 = vand.u32 %v259, 4294901760
        %v917 = vsub.f32 %v259, %v916
        %918 = vmatpush.msra.mxu0 %v917
        %v919 = vand.u32 %v258, 4294901760
        %v920 = vsub.f32 %v258, %v919
        %921 = vmatpush.msra.mxu0 %v920
        %v922 = vand.u32 %v257, 4294901760
        %v923 = vsub.f32 %v257, %v922
        %924 = vmatpush.msra.mxu0 %v923
        %v925 = vand.u32 %v256, 4294901760
        %v926 = vsub.f32 %v256, %v925
        %927 = vmatpush.msra.mxu0 %v926
        %v928 = vand.u32 %v255, 4294901760
        %v929 = vsub.f32 %v255, %v928
        %930 = vmatpush.msra.mxu0 %v929
        %v931 = vand.u32 %v254, 4294901760
        %v932 = vsub.f32 %v254, %v931
        %933 = vmatpush.msra.mxu0 %v932
        %v934 = vand.u32 %v253, 4294901760
        %v935 = vsub.f32 %v253, %v934
        %936 = vmatpush.msra.mxu0 %v935
        %v937 = vand.u32 %v252, 4294901760
        %v938 = vsub.f32 %v252, %v937
        %939 = vmatpush.msra.mxu0 %v938
        %v940 = vand.u32 %v251, 4294901760
        %v941 = vsub.f32 %v251, %v940
        %942 = vmatpush.msra.mxu0 %v941
        %v943 = vand.u32 %v250, 4294901760
        %v944 = vsub.f32 %v250, %v943
        %945 = vmatpush.msra.mxu0 %v944
        %v946 = vand.u32 %v249, 4294901760
        %v947 = vsub.f32 %v249, %v946
        %948 = vmatpush.msra.mxu0 %v947
        %v949 = vand.u32 %v226, 4294901760
        %v950 = vsub.f32 %v226, %v949
        %951 = vmatmul.f32.gmra.mxu0 %v950
        %v952 = vpop.f32.mrf.mxu0
        %v953 = vadd.f32 %v887, %v952
        %v954 = vand.u32 %v228, 4294901760
        %v955 = vsub.f32 %v228, %v954
        %956 = vmatmul.f32.gmra.mxu0 %v955
        %v957 = vpop.f32.mrf.mxu0
        %v958 = vadd.f32 %v891, %v957
        %v959 = vand.u32 %v230, 4294901760
        %v960 = vsub.f32 %v230, %v959
        %961 = vmatmul.f32.gmra.mxu0 %v960
        %v962 = vpop.f32.mrf.mxu0
        %v963 = vadd.f32 %v895, %v962
        %v964 = vand.u32 %v232, 4294901760
        %v965 = vsub.f32 %v232, %v964
        %966 = vmatmul.f32.gmra.mxu0 %v965
        %v967 = vpop.f32.mrf.mxu0
        %v968 = vadd.f32 %v899, %v967
        %969 = vdwg.mxu0
        %v970 = vand.u32 %v264, 4294901760
        %971 = vmatpush.msra.mxu0 %v970
        %v972 = vand.u32 %v263, 4294901760
        %973 = vmatpush.msra.mxu0 %v972
        %v974 = vand.u32 %v262, 4294901760
        %975 = vmatpush.msra.mxu0 %v974
        %v976 = vand.u32 %v261, 4294901760
        %977 = vmatpush.msra.mxu0 %v976
        %v978 = vand.u32 %v260, 4294901760
        %979 = vmatpush.msra.mxu0 %v978
        %v980 = vand.u32 %v259, 4294901760
        %981 = vmatpush.msra.mxu0 %v980
        %v982 = vand.u32 %v258, 4294901760
        %983 = vmatpush.msra.mxu0 %v982
        %v984 = vand.u32 %v257, 4294901760
        %985 = vmatpush.msra.mxu0 %v984
        %v986 = vand.u32 %v256, 4294901760
        %987 = vmatpush.msra.mxu0 %v986
        %v988 = vand.u32 %v255, 4294901760
        %989 = vmatpush.msra.mxu0 %v988
        %v990 = vand.u32 %v254, 4294901760
        %991 = vmatpush.msra.mxu0 %v990
        %v992 = vand.u32 %v253, 4294901760
        %993 = vmatpush.msra.mxu0 %v992
        %v994 = vand.u32 %v252, 4294901760
        %995 = vmatpush.msra.mxu0 %v994
        %v996 = vand.u32 %v251, 4294901760
        %997 = vmatpush.msra.mxu0 %v996
        %v998 = vand.u32 %v250, 4294901760
        %999 = vmatpush.msra.mxu0 %v998
        %v1000 = vand.u32 %v249, 4294901760
        %1001 = vmatpush.msra.mxu0 %v1000
        %v1002 = vand.u32 %v226, 4294901760
        %v1003 = vsub.f32 %v226, %v1002
        %v1004 = vand.u32 %v1003, 4294901760
        %1005 = vmatmul.f32.gmra.mxu0 %v1004
        %v1006 = vpop.f32.mrf.mxu0
        %v1007 = vadd.f32 %v953, %v1006
        %v1008 = vand.u32 %v228, 4294901760
        %v1009 = vsub.f32 %v228, %v1008
        %v1010 = vand.u32 %v1009, 4294901760
        %1011 = vmatmul.f32.gmra.mxu0 %v1010
        %v1012 = vpop.f32.mrf.mxu0
        %v1013 = vadd.f32 %v958, %v1012
        %v1014 = vand.u32 %v230, 4294901760
        %v1015 = vsub.f32 %v230, %v1014
        %v1016 = vand.u32 %v1015, 4294901760
        %1017 = vmatmul.f32.gmra.mxu0 %v1016
        %v1018 = vpop.f32.mrf.mxu0
        %v1019 = vadd.f32 %v963, %v1018
        %v1020 = vand.u32 %v232, 4294901760
        %v1021 = vsub.f32 %v232, %v1020
        %v1022 = vand.u32 %v1021, 4294901760
        %1023 = vmatmul.f32.gmra.mxu0 %v1022
        %v1024 = vpop.f32.mrf.mxu0
        %v1025 = vadd.f32 %v968, %v1024
        %1026 = vdwg.mxu0
        %v1027 = vand.u32 %v264, 4294901760
        %v1028 = vsub.f32 %v264, %v1027
        %v1029 = vand.u32 %v1028, 4294901760
        %1030 = vmatpush.msra.mxu0 %v1029
        %v1031 = vand.u32 %v263, 4294901760
        %v1032 = vsub.f32 %v263, %v1031
        %v1033 = vand.u32 %v1032, 4294901760
        %1034 = vmatpush.msra.mxu0 %v1033
        %v1035 = vand.u32 %v262, 4294901760
        %v1036 = vsub.f32 %v262, %v1035
        %v1037 = vand.u32 %v1036, 4294901760
        %1038 = vmatpush.msra.mxu0 %v1037
        %v1039 = vand.u32 %v261, 4294901760
        %v1040 = vsub.f32 %v261, %v1039
        %v1041 = vand.u32 %v1040, 4294901760
        %1042 = vmatpush.msra.mxu0 %v1041
        %v1043 = vand.u32 %v260, 4294901760
        %v1044 = vsub.f32 %v260, %v1043
        %v1045 = vand.u32 %v1044, 4294901760
        %1046 = vmatpush.msra.mxu0 %v1045
        %v1047 = vand.u32 %v259, 4294901760
        %v1048 = vsub.f32 %v259, %v1047
        %v1049 = vand.u32 %v1048, 4294901760
        %1050 = vmatpush.msra.mxu0 %v1049
        %v1051 = vand.u32 %v258, 4294901760
        %v1052 = vsub.f32 %v258, %v1051
        %v1053 = vand.u32 %v1052, 4294901760
        %1054 = vmatpush.msra.mxu0 %v1053
        %v1055 = vand.u32 %v257, 4294901760
        %v1056 = vsub.f32 %v257, %v1055
        %v1057 = vand.u32 %v1056, 4294901760
        %1058 = vmatpush.msra.mxu0 %v1057
        %v1059 = vand.u32 %v256, 4294901760
        %v1060 = vsub.f32 %v256, %v1059
        %v1061 = vand.u32 %v1060, 4294901760
        %1062 = vmatpush.msra.mxu0 %v1061
        %v1063 = vand.u32 %v255, 4294901760
        %v1064 = vsub.f32 %v255, %v1063
        %v1065 = vand.u32 %v1064, 4294901760
        %1066 = vmatpush.msra.mxu0 %v1065
        %v1067 = vand.u32 %v254, 4294901760
        %v1068 = vsub.f32 %v254, %v1067
        %v1069 = vand.u32 %v1068, 4294901760
        %1070 = vmatpush.msra.mxu0 %v1069
        %v1071 = vand.u32 %v253, 4294901760
        %v1072 = vsub.f32 %v253, %v1071
        %v1073 = vand.u32 %v1072, 4294901760
        %1074 = vmatpush.msra.mxu0 %v1073
        %v1075 = vand.u32 %v252, 4294901760
        %v1076 = vsub.f32 %v252, %v1075
        %v1077 = vand.u32 %v1076, 4294901760
        %1078 = vmatpush.msra.mxu0 %v1077
        %v1079 = vand.u32 %v251, 4294901760
        %v1080 = vsub.f32 %v251, %v1079
        %v1081 = vand.u32 %v1080, 4294901760
        %1082 = vmatpush.msra.mxu0 %v1081
        %v1083 = vand.u32 %v250, 4294901760
        %v1084 = vsub.f32 %v250, %v1083
        %v1085 = vand.u32 %v1084, 4294901760
        %1086 = vmatpush.msra.mxu0 %v1085
        %v1087 = vand.u32 %v249, 4294901760
        %v1088 = vsub.f32 %v249, %v1087
        %v1089 = vand.u32 %v1088, 4294901760
        %1090 = vmatpush.msra.mxu0 %v1089
        %v1091 = vand.u32 %v226, 4294901760
        %1092 = vmatmul.f32.gmra.mxu0 %v1091
        %v1093 = vpop.f32.mrf.mxu0
        %v1094 = vadd.f32 %v1007, %v1093
        %v1095 = vand.u32 %v228, 4294901760
        %1096 = vmatmul.f32.gmra.mxu0 %v1095
        %v1097 = vpop.f32.mrf.mxu0
        %v1098 = vadd.f32 %v1013, %v1097
        %v1099 = vand.u32 %v230, 4294901760
        %1100 = vmatmul.f32.gmra.mxu0 %v1099
        %v1101 = vpop.f32.mrf.mxu0
        %v1102 = vadd.f32 %v1019, %v1101
        %v1103 = vand.u32 %v232, 4294901760
        %1104 = vmatmul.f32.gmra.mxu0 %v1103
        %v1105 = vpop.f32.mrf.mxu0
        %v1106 = vadd.f32 %v1025, %v1105
        %1107 = vdwg.mxu0
        %v1108 = vand.u32 %v264, 4294901760
        %1109 = vmatpush.msra.mxu0 %v1108
        %v1110 = vand.u32 %v263, 4294901760
        %1111 = vmatpush.msra.mxu0 %v1110
        %v1112 = vand.u32 %v262, 4294901760
        %1113 = vmatpush.msra.mxu0 %v1112
        %v1114 = vand.u32 %v261, 4294901760
        %1115 = vmatpush.msra.mxu0 %v1114
        %v1116 = vand.u32 %v260, 4294901760
        %1117 = vmatpush.msra.mxu0 %v1116
        %v1118 = vand.u32 %v259, 4294901760
        %1119 = vmatpush.msra.mxu0 %v1118
        %v1120 = vand.u32 %v258, 4294901760
        %1121 = vmatpush.msra.mxu0 %v1120
        %v1122 = vand.u32 %v257, 4294901760
        %1123 = vmatpush.msra.mxu0 %v1122
        %v1124 = vand.u32 %v256, 4294901760
        %1125 = vmatpush.msra.mxu0 %v1124
        %v1126 = vand.u32 %v255, 4294901760
        %1127 = vmatpush.msra.mxu0 %v1126
        %v1128 = vand.u32 %v254, 4294901760
        %1129 = vmatpush.msra.mxu0 %v1128
        %v1130 = vand.u32 %v253, 4294901760
        %1131 = vmatpush.msra.mxu0 %v1130
        %v1132 = vand.u32 %v252, 4294901760
        %1133 = vmatpush.msra.mxu0 %v1132
        %v1134 = vand.u32 %v251, 4294901760
        %1135 = vmatpush.msra.mxu0 %v1134
        %v1136 = vand.u32 %v250, 4294901760
        %1137 = vmatpush.msra.mxu0 %v1136
        %v1138 = vand.u32 %v249, 4294901760
        %1139 = vmatpush.msra.mxu0 %v1138
        %v1140 = vand.u32 %v226, 4294901760
        %1141 = vmatmul.f32.gmra.mxu0 %v1140
        %v1142 = vpop.f32.mrf.mxu0
        %v1143 = vadd.f32 %v1094, %v1142
        %v1144 = vand.u32 %v228, 4294901760
        %1145 = vmatmul.f32.gmra.mxu0 %v1144
        %v1146 = vpop.f32.mrf.mxu0
        %v1147 = vadd.f32 %v1098, %v1146
        %v1148 = vand.u32 %v230, 4294901760
        %1149 = vmatmul.f32.gmra.mxu0 %v1148
        %v1150 = vpop.f32.mrf.mxu0
        %v1151 = vadd.f32 %v1102, %v1150
        %v1152 = vand.u32 %v232, 4294901760
        %1153 = vmatmul.f32.gmra.mxu0 %v1152
        %v1154 = vpop.f32.mrf.mxu0
        %v1155 = vadd.f32 %v1106, %v1154
        %1156 = vdwg.mxu0
        %1157 = vst [vmem:[%s224] sm:$0xff] %v1143
        %1158 = vst [vmem:[%s224 + $0x8] sm:$0xff] %v1147
        %1159 = vst [vmem:[%s224 + $0x10] sm:$0xff] %v1151
        %1160 = vst [vmem:[%s224 + $0x18] sm:$0xff] %v1155
        %s1161 = sand.u32 %s113, 1
        %s1162 = scalar_lea.sflag [#allocation4], %s1161
        %s1163 = sand.u32 %s113, 1
        %s1164 = smul.addr %s1163, 32
        %s1165 = scalar_lea.vmem [#allocation7], %s1164
        // Predicated region
        $region41: #{tpu_custom_call.1} parent=31 // pred_check
          %p1166 = pneg %p123
        $region42: #{tpu_custom_call.1} parent=31 // pred_check_branch
          %1168 = sbr.rel (%p1166) target = $region44
        $region43: #{tpu_custom_call.1} parent=31 // pred_region
          %1170 = vsyncadd %s1162, 0
          %s1171 = smul.addr %s25, 4
          %s1172 = sadd.s32 %s26, %s1171
          %s1173 = smul.addr %s1172, 8
          %s1174 = scalar_lea.hbm %s3, %s1173
          %s1175 = sshll.u32 %s1165, 4
          %s1176 = int_to_ptr.vmem [resolvable:$true] %s1175
          %s1177 = sshll.u32 %s1174, 4
          %s1178 = int_to_ptr.hbm [resolvable:$true] %s1177
          %1183 = dma.vmem_to_hbm [thread:$0]  %s1176, 512, %s1178, %s1162, 128, 128, 8
        $region44: #{tpu_custom_call.1} parent=31 // pred_fallthru
          _
      $region32: #{tpu_custom_call.1} parent=5 // pred_fallthru
        _
      %p1184 = scmp.le.s32.totalorder 2, %s16
      // Predicated region
      $region45: #{tpu_custom_call.1} parent=5 // pred_check
        %p1185 = pneg %p1184
      $region46: #{tpu_custom_call.1} parent=5 // pred_check_branch
        %1187 = sbr.rel (%p1185) target = $region48
      $region47: #{tpu_custom_call.1} parent=5 // pred_region
        %s1188 = ssub.s32 %s16, 2
        // Predicated region
        $region49: #{tpu_custom_call.1} parent=47 // pred_check
          %p1189 = pneg %p129
        $region50: #{tpu_custom_call.1} parent=47 // pred_check_branch
          %1191 = sbr.rel (%p1189) target = $region52
        $region51: #{tpu_custom_call.1} parent=47 // pred_region
          %s1192 = sand.u32 %s114, 1
          %s1193 = scalar_lea.sflag [#allocation4], %s1192
          %s1194 = sand.u32 %s114, 1
          %s1195 = smul.addr %s1194, 32
          %s1196 = scalar_lea.vmem [#allocation7], %s1195
          %1198 = dma.done %s1193, 512
        $region52: #{tpu_custom_call.1} parent=47 // pred_fallthru
          _
      $region48: #{tpu_custom_call.1} parent=5 // pred_fallthru
        _
    $region6: #{tpu_custom_call.1} parent=1 // loop_footer
      %s20 = sadd.s32 1, %s16
    $region7: #{tpu_custom_call.1} parent=1 // loop_footer_branch
      %15 = sbr.rel target = $region3
    $region8: #{tpu_custom_call.1} parent=1 // loop_exit
      _
    %1199 = vsyncpa [#allocation3], 1
    %s1200 = scalar_lea.sflag [#allocation3], 1
    %1201 = vsyncpa %s1200, 1
    %1202 = vsyncpa [#allocation6], 1
    %1203 = vsyncpa [#allocation4], 1
    %s1204 = scalar_lea.sflag [#allocation4], 1
    %1205 = vsyncpa %s1204, 1

</llo_original>
